<compile_context>
chip_gen: v5e
topology: v5e:2x2
jax: 0.10.0
libtpu: 0.0.40
codegen_flags: <defaults>
</compile_context>

<pallas_src>
import functools
import math

import jax
import jax.numpy as jnp
from jax.experimental import pallas as pl
from jax.experimental.pallas import tpu as pltpu

_NEG = -1e30  # finite "minus infinity" (avoids any inf-inf NaN risk; exp underflows to 0)


def _longformer_band_kernel(q_ref, kp_ref, kc_ref, kn_ref,
                            vp_ref, vc_ref, vn_ref, bias_ref, out_ref,
                            *, num_heads, head_dim, window, q_tile):
    """One grid step = (batch b, query tile t).

    q_ref    : (1, TQ, E)       bf16, already scaled by 1/sqrt(head_dim)
    k*_ref   : (1, TQ, E) x 3   bf16 chunks of zero-padded keys covering padded
                                rows [t*TQ, (t+3)*TQ)  (the key band of tile t)
    v*_ref   : same, for values
    bias_ref : (1, 1, 1, 3*TQ)  f32 additive key bias for this tile's key band
                                (-1e30 out of range, -10000 where mask != 0)
    out_ref  : (1, TQ, E)       f32
    """
    TQ = q_tile
    KB = 3 * TQ

    q = q_ref[0]                                                     # (TQ, E) bf16
    k_band = jnp.concatenate([kp_ref[0], kc_ref[0], kn_ref[0]], 0)   # (KB, E) bf16
    v_band = jnp.concatenate([vp_ref[0], vc_ref[0], vn_ref[0]], 0)   # (KB, E) bf16
    bias_row = bias_ref[0, 0]                                        # (1, KB)  f32

    # Tile-relative band mask (independent of grid position): query row qq is
    # original position t*TQ + qq, band column kk is original key t*TQ + kk - TQ,
    # so |i - j| <= w  <=>  |qq + TQ - kk| <= w.
    qq = jax.lax.broadcasted_iota(jnp.int32, (TQ, KB), 0)
    kk = jax.lax.broadcasted_iota(jnp.int32, (TQ, KB), 1)
    in_band = jnp.abs(qq + TQ - kk) <= window
    # Fused additive bias (band + key mask): one add per head inside the loop.
    bias2d = jnp.where(in_band, bias_row, jnp.float32(_NEG))         # (TQ, KB)

    # NOTE: heads are unrolled statically; for large num_heads fold heads into a
    # grid axis (B*H, S//TQ) instead to bound vreg live ranges.
    head_outs = []
    for h in range(num_heads):
        sl = slice(h * head_dim, (h + 1) * head_dim)
        qh = q[:, sl]                                                # (TQ, D) bf16
        kh = k_band[:, sl]                                           # (KB, D) bf16
        vh = v_band[:, sl]                                           # (KB, D) bf16

        # Q . K^T without materializing a transposed copy of K.
        s = jax.lax.dot_general(qh, kh, (((1,), (1,)), ((), ())),
                                preferred_element_type=jnp.float32)  # (TQ, KB) f32
        s = s + bias2d

        # f32 softmax over the key band (exp / reciprocal on the EUP slot).
        m = jnp.max(s, axis=-1, keepdims=True)
        p = jnp.exp(s - m)
        denom = jnp.sum(p, axis=-1, keepdims=True)
        p = p * pl.reciprocal(denom, approx=True)
        # TODO(synk): dropout on attn_probs skipped (p=0.0 / eval mode in reference).

        head_outs.append(jnp.dot(p.astype(vh.dtype), vh,
                                 preferred_element_type=jnp.float32))  # (TQ, D) f32

    # Lane-dense output slab: a single (TQ, E) store per grid step.
    out_ref[0] = jnp.concatenate(head_outs, axis=-1).astype(out_ref.dtype)


def _pick_q_tile(seq_len, window):
    """A divisor of seq_len that is a multiple of 8, >= window, and ~256 if possible."""
    cands = [t for t in range(8, seq_len + 1, 8) if seq_len % t == 0 and t >= window]
    if not cands:
        return seq_len
    target = max(window, min(256, seq_len))
    for t in cands:
        if t >= target:
            return t
    return cands[-1]


def longformer_self_attention(hidden_states, attention_mask, params,
                              num_heads, attention_window, *, q_tile=None,
                              compute_dtype=jnp.bfloat16):
    """hidden_states: (seq, batch, embed) float32; attention_mask: (batch, seq).
    Returns (batch, seq, embed) float32, matching the PyTorch module output[0]."""
    S, B, E = hidden_states.shape
    D = E // num_heads
    assert D * num_heads == E
    w = attention_window // 2
    assert S % (2 * w) == 0, "seq_len must be a multiple of attention_window"

    TQ = q_tile if q_tile is not None else _pick_q_tile(S, w)
    assert S % TQ == 0, "q_tile must divide seq_len"
    assert TQ >= w, "q_tile must be >= one-sided window"
    QT = S // TQ
    KB = 3 * TQ

    x = jnp.transpose(hidden_states, (1, 0, 2)).astype(jnp.float32)          # (B,S,E)

    # Q/K/V projections hoisted out of the kernel: full-MXU-utilization XLA matmuls
    # (bf16 inputs, f32 accumulation), instead of grid-invariant weights in VMEM.
    xc = x.astype(compute_dtype)
    wqT = params["wq"].T.astype(compute_dtype)
    wkT = params["wk"].T.astype(compute_dtype)
    wvT = params["wv"].T.astype(compute_dtype)
    q = jnp.dot(xc, wqT, preferred_element_type=jnp.float32) + params["bq"].astype(jnp.float32)
    k = jnp.dot(xc, wkT, preferred_element_type=jnp.float32) + params["bk"].astype(jnp.float32)
    v = jnp.dot(xc, wvT, preferred_element_type=jnp.float32) + params["bv"].astype(jnp.float32)
    q = (q * jnp.float32(1.0 / math.sqrt(D))).astype(compute_dtype)
    k = k.astype(compute_dtype)
    v = v.astype(compute_dtype)

    # Zero-pad keys/values by one query tile on each side of the sequence, so the
    # key band of query tile t is exactly padded chunks [t, t+1, t+2].
    k_pad = jnp.pad(k, ((0, 0), (TQ, TQ), (0, 0)))                           # (B, S+2TQ, E)
    v_pad = jnp.pad(v, ((0, 0), (TQ, TQ), (0, 0)))

    # Additive key bias: any nonzero attention_mask entry at the key position adds
    # -10000 (local/global/no-attn all collapse to this in the reference module);
    # padded / out-of-range keys get -1e30 (-> zero probability after softmax).
    if attention_mask is None:
        attention_mask = jnp.zeros((B, S), dtype=jnp.float32)
    mask = attention_mask.reshape(B, S)
    key_bias = jnp.where(mask != 0, jnp.float32(-10000.0), jnp.float32(0.0))
    key_bias = jnp.pad(key_bias, ((0, 0), (TQ, TQ)), constant_values=_NEG)   # (B, S+2TQ)
    gather_idx = (jnp.arange(QT, dtype=jnp.int32)[:, None] * TQ
                  + jnp.arange(KB, dtype=jnp.int32)[None, :])                # (QT, KB)
    bias_tiles = key_bias[:, gather_idx].reshape(B, QT, 1, KB)               # tiny (f32)

    kernel = functools.partial(_longformer_band_kernel, num_heads=num_heads,
                               head_dim=D, window=w, q_tile=TQ)

    out = pl.pallas_call(
        kernel,
        out_shape=jax.ShapeDtypeStruct((B, S, E), jnp.float32),
        grid=(B, QT),
        in_specs=[
            pl.BlockSpec((1, TQ, E), lambda b, t: (b, t, 0)),         # q tile
            pl.BlockSpec((1, TQ, E), lambda b, t: (b, t, 0)),         # k chunk t
            pl.BlockSpec((1, TQ, E), lambda b, t: (b, t + 1, 0)),     # k chunk t+1
            pl.BlockSpec((1, TQ, E), lambda b, t: (b, t + 2, 0)),     # k chunk t+2
            pl.BlockSpec((1, TQ, E), lambda b, t: (b, t, 0)),         # v chunk t
            pl.BlockSpec((1, TQ, E), lambda b, t: (b, t + 1, 0)),     # v chunk t+1
            pl.BlockSpec((1, TQ, E), lambda b, t: (b, t + 2, 0)),     # v chunk t+2
            pl.BlockSpec((1, 1, 1, KB), lambda b, t: (b, t, 0, 0)),   # key-band bias
        ],
        out_specs=pl.BlockSpec((1, TQ, E), lambda b, t: (b, t, 0)),
        compiler_params=pltpu.CompilerParams(
            dimension_semantics=("parallel", "parallel"),
            vmem_limit_bytes=48 * 1024 * 1024),
    )(q, k_pad, k_pad, k_pad, v_pad, v_pad, v_pad, bias_tiles)
    return out


def _reference(hidden_states, attention_mask, params, num_heads, attention_window):
    """Pure-JAX f32 reference with identical banded-attention semantics."""
    S, B, E = hidden_states.shape
    D = E // num_heads
    w = attention_window // 2
    x = jnp.transpose(hidden_states, (1, 0, 2))                       # (B, S, E)
    q = (x @ params["wq"].T + params["bq"]) / math.sqrt(D)
    k = x @ params["wk"].T + params["bk"]
    v = x @ params["wv"].T + params["bv"]
    q = q.reshape(B, S, num_heads, D)
    k = k.reshape(B, S, num_heads, D)
    v = v.reshape(B, S, num_heads, D)
    scores = jnp.einsum("bqhd,bkhd->bhqk", q, k)                      # (B,H,S,S)
    add = jnp.where(attention_mask != 0, -10000.0, 0.0)[:, None, None, :]
    scores = scores + add
    qi = jnp.arange(S)[:, None]
    kj = jnp.arange(S)[None, :]
    band = (jnp.abs(qi - kj) <= w)[None, None]
    scores = jnp.where(band, scores, -jnp.inf)
    probs = jax.nn.softmax(scores, axis=-1)
    out = jnp.einsum("bhqk,bkhd->bqhd", probs, v)                     # (B,S,H,D)
    return out.reshape(B, S, E)


if __name__ == "__main__":
    # Small, attention-window-consistent shapes; q_tile=8 exercises multiple tiles.
    embed_dim = 32
    num_heads = 4
    attention_window = 8          # one-sided window w = 4
    seq_len = 16                  # multiple of attention_window
    batch_size = 2

    key = jax.random.PRNGKey(0)
    k_h, k_wq, k_wk, k_wv, k_bq, k_bk, k_bv = jax.random.split(key, 7)

    hidden_states = jax.random.normal(k_h, (seq_len, batch_size, embed_dim),
                                      dtype=jnp.float32)

    params = {
        "wq": 0.05 * jax.random.normal(k_wq, (embed_dim, embed_dim), jnp.float32),
        "wk": 0.05 * jax.random.normal(k_wk, (embed_dim, embed_dim), jnp.float32),
        "wv": 0.05 * jax.random.normal(k_wv, (embed_dim, embed_dim), jnp.float32),
        "bq": 0.01 * jax.random.normal(k_bq, (embed_dim,), jnp.float32),
        "bk": 0.01 * jax.random.normal(k_bk, (embed_dim,), jnp.float32),
        "bv": 0.01 * jax.random.normal(k_bv, (embed_dim,), jnp.float32),
    }

    # attention_mask values follow LongformerModel convention: 0 local, +-10000 special.
    attention_mask = jnp.zeros((batch_size, seq_len), dtype=jnp.float32)
    attention_mask = attention_mask.at[0, 0].set(10000.0)    # global-attn token
    attention_mask = attention_mask.at[1, 5].set(-10000.0)   # padded / no-attn token

    out = longformer_self_attention(hidden_states, attention_mask, params,
                                    num_heads, attention_window, q_tile=8)
    out = jax.block_until_ready(out)

    ref = _reference(hidden_states, attention_mask, params, num_heads, attention_window)
    assert out.shape == (batch_size, seq_len, embed_dim)
    # bf16 matmuls + approx reciprocal -> loosened tolerance vs the f32 reference.
    assert jnp.allclose(out, ref, rtol=2e-2, atol=2e-2), "mismatch vs reference"

    print("KERNEL_OK")
</pallas_src>

<mosaic_0001>
module attributes {stable_mosaic.version = 11 : i64} {
  func.func @_longformer_band_kernel(%arg0: i32, %arg1: i32, %arg2: memref<1x8x32xbf16, #tpu.memory_space<vmem>>, %arg3: memref<1x8x32xbf16, #tpu.memory_space<vmem>>, %arg4: memref<1x8x32xbf16, #tpu.memory_space<vmem>>, %arg5: memref<1x8x32xbf16, #tpu.memory_space<vmem>>, %arg6: memref<1x8x32xbf16, #tpu.memory_space<vmem>>, %arg7: memref<1x8x32xbf16, #tpu.memory_space<vmem>>, %arg8: memref<1x8x32xbf16, #tpu.memory_space<vmem>>, %arg9: memref<1x1x1x24xf32, #tpu.memory_space<vmem>>, %arg10: memref<1x8x32xf32, #tpu.memory_space<vmem>>) attributes {dimension_semantics = [#tpu.dimension_semantics<parallel>, #tpu.dimension_semantics<parallel>], iteration_bounds = array<i64: 2, 2>, scalar_prefetch = 0 : i64, scratch_operands = 0 : i64, tpu.core_type = #tpu.core_type<tc>, window_params = [{transform_indices = @transform_0, window_bounds = array<i64: 1, 8, 32>}, {transform_indices = @transform_1, window_bounds = array<i64: 1, 8, 32>}, {transform_indices = @transform_2, window_bounds = array<i64: 1, 8, 32>}, {transform_indices = @transform_3, window_bounds = array<i64: 1, 8, 32>}, {transform_indices = @transform_4, window_bounds = array<i64: 1, 8, 32>}, {transform_indices = @transform_5, window_bounds = array<i64: 1, 8, 32>}, {transform_indices = @transform_6, window_bounds = array<i64: 1, 8, 32>}, {transform_indices = @transform_7, window_bounds = array<i64: 1, 1, 1, 24>}, {transform_indices = @transform_8, window_bounds = array<i64: 1, 8, 32>}]} {
    %c0 = arith.constant 0 : index
    %c0_0 = arith.constant 0 : index
    %c0_1 = arith.constant 0 : index
    %0 = vector.load %arg2[%c0, %c0_0, %c0_1] : memref<1x8x32xbf16, #tpu.memory_space<vmem>>, vector<1x8x32xbf16>
    %1 = vector.shape_cast %0 : vector<1x8x32xbf16> to vector<8x32xbf16>
    %c0_2 = arith.constant 0 : index
    %c0_3 = arith.constant 0 : index
    %c0_4 = arith.constant 0 : index
    %2 = vector.load %arg3[%c0_2, %c0_3, %c0_4] : memref<1x8x32xbf16, #tpu.memory_space<vmem>>, vector<1x8x32xbf16>
    %3 = vector.shape_cast %2 : vector<1x8x32xbf16> to vector<8x32xbf16>
    %c0_5 = arith.constant 0 : index
    %c0_6 = arith.constant 0 : index
    %c0_7 = arith.constant 0 : index
    %4 = vector.load %arg4[%c0_5, %c0_6, %c0_7] : memref<1x8x32xbf16, #tpu.memory_space<vmem>>, vector<1x8x32xbf16>
    %5 = vector.shape_cast %4 : vector<1x8x32xbf16> to vector<8x32xbf16>
    %c0_8 = arith.constant 0 : index
    %c0_9 = arith.constant 0 : index
    %c0_10 = arith.constant 0 : index
    %6 = vector.load %arg5[%c0_8, %c0_9, %c0_10] : memref<1x8x32xbf16, #tpu.memory_space<vmem>>, vector<1x8x32xbf16>
    %7 = vector.shape_cast %6 : vector<1x8x32xbf16> to vector<8x32xbf16>
    %8 = tpu.concatenate %3, %5, %7 in 0 : vector<8x32xbf16>, vector<8x32xbf16>, vector<8x32xbf16> -> vector<24x32xbf16>
    %c0_11 = arith.constant 0 : index
    %c0_12 = arith.constant 0 : index
    %c0_13 = arith.constant 0 : index
    %9 = vector.load %arg6[%c0_11, %c0_12, %c0_13] : memref<1x8x32xbf16, #tpu.memory_space<vmem>>, vector<1x8x32xbf16>
    %10 = vector.shape_cast %9 : vector<1x8x32xbf16> to vector<8x32xbf16>
    %c0_14 = arith.constant 0 : index
    %c0_15 = arith.constant 0 : index
    %c0_16 = arith.constant 0 : index
    %11 = vector.load %arg7[%c0_14, %c0_15, %c0_16] : memref<1x8x32xbf16, #tpu.memory_space<vmem>>, vector<1x8x32xbf16>
    %12 = vector.shape_cast %11 : vector<1x8x32xbf16> to vector<8x32xbf16>
    %c0_17 = arith.constant 0 : index
    %c0_18 = arith.constant 0 : index
    %c0_19 = arith.constant 0 : index
    %13 = vector.load %arg8[%c0_17, %c0_18, %c0_19] : memref<1x8x32xbf16, #tpu.memory_space<vmem>>, vector<1x8x32xbf16>
    %14 = vector.shape_cast %13 : vector<1x8x32xbf16> to vector<8x32xbf16>
    %15 = tpu.concatenate %10, %12, %14 in 0 : vector<8x32xbf16>, vector<8x32xbf16>, vector<8x32xbf16> -> vector<24x32xbf16>
    %c0_20 = arith.constant 0 : index
    %c0_21 = arith.constant 0 : index
    %c0_22 = arith.constant 0 : index
    %c0_23 = arith.constant 0 : index
    %16 = vector.load %arg9[%c0_20, %c0_21, %c0_22, %c0_23] : memref<1x1x1x24xf32, #tpu.memory_space<vmem>>, vector<1x1x1x24xf32>
    %17 = vector.shape_cast %16 : vector<1x1x1x24xf32> to vector<1x24xf32>
    %18 = tpu.iota {dimensions = array<i32: 0>} : vector<8x24xi32>
    %19 = tpu.iota {dimensions = array<i32: 1>} : vector<8x24xi32>
    %c8_i32 = arith.constant 8 : i32
    %20 = vector.broadcast %c8_i32 : i32 to vector<8x24xi32>
    %21 = arith.addi %18, %20 : vector<8x24xi32>
    %22 = arith.subi %21, %19 : vector<8x24xi32>
    %23 = math.absi %22 : vector<8x24xi32>
    %c4_i32 = arith.constant 4 : i32
    %24 = vector.broadcast %c4_i32 : i32 to vector<8x24xi32>
    %25 = arith.cmpi sle, %23, %24 : vector<8x24xi32>
    %cst = arith.constant -1.000000e+30 : f32
    %26 = vector.shape_cast %17 : vector<1x24xf32> to vector<1x24xf32>
    %27 = vector.broadcast %26 : vector<1x24xf32> to vector<8x24xf32>
    %28 = vector.broadcast %cst : f32 to vector<8x24xf32>
    %29 = arith.select %25, %27, %28 : vector<8x24xi1>, vector<8x24xf32>
    %30 = vector.extract_strided_slice %1 {offsets = [0, 0], sizes = [8, 8], strides = [1, 1]} : vector<8x32xbf16> to vector<8x8xbf16>
    %31 = vector.extract_strided_slice %8 {offsets = [0, 0], sizes = [24, 8], strides = [1, 1]} : vector<24x32xbf16> to vector<24x8xbf16>
    %32 = vector.extract_strided_slice %15 {offsets = [0, 0], sizes = [24, 8], strides = [1, 1]} : vector<24x32xbf16> to vector<24x8xbf16>
    %cst_24 = arith.constant dense<0.000000e+00> : vector<8x24xf32>
    %33 = tpu.matmul %30, %31, %cst_24 {dimension_numbers = #tpu.dot_dimension_numbers<[1], [1], [0], [0], [0, 0, 1, 0], [], []>} : vector<8x8xbf16>, vector<24x8xbf16>, vector<8x24xf32> -> vector<8x24xf32>
    %34 = arith.addf %33, %29 : vector<8x24xf32>
    %cst_25 = arith.constant dense<0xFF800000> : vector<8xf32>
    %35 = vector.multi_reduction <maximumf>, %34, %cst_25 [1] : vector<8x24xf32> to vector<8xf32>
    %36 = vector.shape_cast %35 : vector<8xf32> to vector<8x1xf32>
    %37 = vector.broadcast %36 : vector<8x1xf32> to vector<8x24xf32>
    %38 = arith.subf %34, %37 : vector<8x24xf32>
    %39 = math.exp %38 : vector<8x24xf32>
    %cst_26 = arith.constant dense<0.000000e+00> : vector<8xf32>
    %40 = vector.multi_reduction <add>, %39, %cst_26 [1] : vector<8x24xf32> to vector<8xf32>
    %41 = vector.shape_cast %40 : vector<8xf32> to vector<8x1xf32>
    %42 = tpu.reciprocal %41 {approx = true} : vector<8x1xf32> -> vector<8x1xf32>
    %43 = vector.broadcast %42 : vector<8x1xf32> to vector<8x24xf32>
    %44 = arith.mulf %39, %43 : vector<8x24xf32>
    %45 = arith.truncf %44 : vector<8x24xf32> to vector<8x24xbf16>
    %cst_27 = arith.constant dense<0.000000e+00> : vector<8x8xf32>
    %46 = tpu.matmul %45, %32, %cst_27 {dimension_numbers = #tpu.dot_dimension_numbers<[1], [0], [0], [1], [0, 0, 1, 1], [], []>} : vector<8x24xbf16>, vector<24x8xbf16>, vector<8x8xf32> -> vector<8x8xf32>
    %47 = vector.extract_strided_slice %1 {offsets = [0, 8], sizes = [8, 8], strides = [1, 1]} : vector<8x32xbf16> to vector<8x8xbf16>
    %48 = vector.extract_strided_slice %8 {offsets = [0, 8], sizes = [24, 8], strides = [1, 1]} : vector<24x32xbf16> to vector<24x8xbf16>
    %49 = vector.extract_strided_slice %15 {offsets = [0, 8], sizes = [24, 8], strides = [1, 1]} : vector<24x32xbf16> to vector<24x8xbf16>
    %cst_28 = arith.constant dense<0.000000e+00> : vector<8x24xf32>
    %50 = tpu.matmul %47, %48, %cst_28 {dimension_numbers = #tpu.dot_dimension_numbers<[1], [1], [0], [0], [0, 0, 1, 0], [], []>} : vector<8x8xbf16>, vector<24x8xbf16>, vector<8x24xf32> -> vector<8x24xf32>
    %51 = arith.addf %50, %29 : vector<8x24xf32>
    %cst_29 = arith.constant dense<0xFF800000> : vector<8xf32>
    %52 = vector.multi_reduction <maximumf>, %51, %cst_29 [1] : vector<8x24xf32> to vector<8xf32>
    %53 = vector.shape_cast %52 : vector<8xf32> to vector<8x1xf32>
    %54 = vector.broadcast %53 : vector<8x1xf32> to vector<8x24xf32>
    %55 = arith.subf %51, %54 : vector<8x24xf32>
    %56 = math.exp %55 : vector<8x24xf32>
    %cst_30 = arith.constant dense<0.000000e+00> : vector<8xf32>
    %57 = vector.multi_reduction <add>, %56, %cst_30 [1] : vector<8x24xf32> to vector<8xf32>
    %58 = vector.shape_cast %57 : vector<8xf32> to vector<8x1xf32>
    %59 = tpu.reciprocal %58 {approx = true} : vector<8x1xf32> -> vector<8x1xf32>
    %60 = vector.broadcast %59 : vector<8x1xf32> to vector<8x24xf32>
    %61 = arith.mulf %56, %60 : vector<8x24xf32>
    %62 = arith.truncf %61 : vector<8x24xf32> to vector<8x24xbf16>
    %cst_31 = arith.constant dense<0.000000e+00> : vector<8x8xf32>
    %63 = tpu.matmul %62, %49, %cst_31 {dimension_numbers = #tpu.dot_dimension_numbers<[1], [0], [0], [1], [0, 0, 1, 1], [], []>} : vector<8x24xbf16>, vector<24x8xbf16>, vector<8x8xf32> -> vector<8x8xf32>
    %64 = vector.extract_strided_slice %1 {offsets = [0, 16], sizes = [8, 8], strides = [1, 1]} : vector<8x32xbf16> to vector<8x8xbf16>
    %65 = vector.extract_strided_slice %8 {offsets = [0, 16], sizes = [24, 8], strides = [1, 1]} : vector<24x32xbf16> to vector<24x8xbf16>
    %66 = vector.extract_strided_slice %15 {offsets = [0, 16], sizes = [24, 8], strides = [1, 1]} : vector<24x32xbf16> to vector<24x8xbf16>
    %cst_32 = arith.constant dense<0.000000e+00> : vector<8x24xf32>
    %67 = tpu.matmul %64, %65, %cst_32 {dimension_numbers = #tpu.dot_dimension_numbers<[1], [1], [0], [0], [0, 0, 1, 0], [], []>} : vector<8x8xbf16>, vector<24x8xbf16>, vector<8x24xf32> -> vector<8x24xf32>
    %68 = arith.addf %67, %29 : vector<8x24xf32>
    %cst_33 = arith.constant dense<0xFF800000> : vector<8xf32>
    %69 = vector.multi_reduction <maximumf>, %68, %cst_33 [1] : vector<8x24xf32> to vector<8xf32>
    %70 = vector.shape_cast %69 : vector<8xf32> to vector<8x1xf32>
    %71 = vector.broadcast %70 : vector<8x1xf32> to vector<8x24xf32>
    %72 = arith.subf %68, %71 : vector<8x24xf32>
    %73 = math.exp %72 : vector<8x24xf32>
    %cst_34 = arith.constant dense<0.000000e+00> : vector<8xf32>
    %74 = vector.multi_reduction <add>, %73, %cst_34 [1] : vector<8x24xf32> to vector<8xf32>
    %75 = vector.shape_cast %74 : vector<8xf32> to vector<8x1xf32>
    %76 = tpu.reciprocal %75 {approx = true} : vector<8x1xf32> -> vector<8x1xf32>
    %77 = vector.broadcast %76 : vector<8x1xf32> to vector<8x24xf32>
    %78 = arith.mulf %73, %77 : vector<8x24xf32>
    %79 = arith.truncf %78 : vector<8x24xf32> to vector<8x24xbf16>
    %cst_35 = arith.constant dense<0.000000e+00> : vector<8x8xf32>
    %80 = tpu.matmul %79, %66, %cst_35 {dimension_numbers = #tpu.dot_dimension_numbers<[1], [0], [0], [1], [0, 0, 1, 1], [], []>} : vector<8x24xbf16>, vector<24x8xbf16>, vector<8x8xf32> -> vector<8x8xf32>
    %81 = vector.extract_strided_slice %1 {offsets = [0, 24], sizes = [8, 8], strides = [1, 1]} : vector<8x32xbf16> to vector<8x8xbf16>
    %82 = vector.extract_strided_slice %8 {offsets = [0, 24], sizes = [24, 8], strides = [1, 1]} : vector<24x32xbf16> to vector<24x8xbf16>
    %83 = vector.extract_strided_slice %15 {offsets = [0, 24], sizes = [24, 8], strides = [1, 1]} : vector<24x32xbf16> to vector<24x8xbf16>
    %cst_36 = arith.constant dense<0.000000e+00> : vector<8x24xf32>
    %84 = tpu.matmul %81, %82, %cst_36 {dimension_numbers = #tpu.dot_dimension_numbers<[1], [1], [0], [0], [0, 0, 1, 0], [], []>} : vector<8x8xbf16>, vector<24x8xbf16>, vector<8x24xf32> -> vector<8x24xf32>
    %85 = arith.addf %84, %29 : vector<8x24xf32>
    %cst_37 = arith.constant dense<0xFF800000> : vector<8xf32>
    %86 = vector.multi_reduction <maximumf>, %85, %cst_37 [1] : vector<8x24xf32> to vector<8xf32>
    %87 = vector.shape_cast %86 : vector<8xf32> to vector<8x1xf32>
    %88 = vector.broadcast %87 : vector<8x1xf32> to vector<8x24xf32>
    %89 = arith.subf %85, %88 : vector<8x24xf32>
    %90 = math.exp %89 : vector<8x24xf32>
    %cst_38 = arith.constant dense<0.000000e+00> : vector<8xf32>
    %91 = vector.multi_reduction <add>, %90, %cst_38 [1] : vector<8x24xf32> to vector<8xf32>
    %92 = vector.shape_cast %91 : vector<8xf32> to vector<8x1xf32>
    %93 = tpu.reciprocal %92 {approx = true} : vector<8x1xf32> -> vector<8x1xf32>
    %94 = vector.broadcast %93 : vector<8x1xf32> to vector<8x24xf32>
    %95 = arith.mulf %90, %94 : vector<8x24xf32>
    %96 = arith.truncf %95 : vector<8x24xf32> to vector<8x24xbf16>
    %cst_39 = arith.constant dense<0.000000e+00> : vector<8x8xf32>
    %97 = tpu.matmul %96, %83, %cst_39 {dimension_numbers = #tpu.dot_dimension_numbers<[1], [0], [0], [1], [0, 0, 1, 1], [], []>} : vector<8x24xbf16>, vector<24x8xbf16>, vector<8x8xf32> -> vector<8x8xf32>
    %98 = tpu.concatenate %46, %63, %80, %97 in 1 : vector<8x8xf32>, vector<8x8xf32>, vector<8x8xf32>, vector<8x8xf32> -> vector<8x32xf32>
    %c0_40 = arith.constant 0 : index
    %c0_41 = arith.constant 0 : index
    %c0_42 = arith.constant 0 : index
    %99 = vector.load %arg10[%c0_40, %c0_41, %c0_42] : memref<1x8x32xf32, #tpu.memory_space<vmem>>, vector<1x8x32xf32>
    %100 = vector.shape_cast %99 : vector<1x8x32xf32> to vector<8x32xf32>
    %101 = vector.shape_cast %98 : vector<8x32xf32> to vector<1x8x32xf32>
    tpu.vector_store %arg10[%c0_40, %c0_41, %c0_42], %101 {strides = array<i32>} : memref<1x8x32xf32, #tpu.memory_space<vmem>>, vector<1x8x32xf32>,
    return
  }
  func.func @transform_0(%arg0: i32, %arg1: i32) -> (i32, i32, i32) {
    %c0_i32 = arith.constant 0 : i32
    %c0_i32_0 = arith.constant 0 : i32
    return %arg0, %arg1, %c0_i32 : i32, i32, i32
  }
  func.func @transform_1(%arg0: i32, %arg1: i32) -> (i32, i32, i32) {
    %c0_i32 = arith.constant 0 : i32
    %c0_i32_0 = arith.constant 0 : i32
    return %arg0, %arg1, %c0_i32 : i32, i32, i32
  }
  func.func @transform_2(%arg0: i32, %arg1: i32) -> (i32, i32, i32) {
    %c1_i32 = arith.constant 1 : i32
    %0 = arith.addi %arg1, %c1_i32 : i32
    %c0_i32 = arith.constant 0 : i32
    %c0_i32_0 = arith.constant 0 : i32
    return %arg0, %0, %c0_i32 : i32, i32, i32
  }
  func.func @transform_3(%arg0: i32, %arg1: i32) -> (i32, i32, i32) {
    %c2_i32 = arith.constant 2 : i32
    %0 = arith.addi %arg1, %c2_i32 : i32
    %c0_i32 = arith.constant 0 : i32
    %c0_i32_0 = arith.constant 0 : i32
    return %arg0, %0, %c0_i32 : i32, i32, i32
  }
  func.func @transform_4(%arg0: i32, %arg1: i32) -> (i32, i32, i32) {
    %c0_i32 = arith.constant 0 : i32
    %c0_i32_0 = arith.constant 0 : i32
    return %arg0, %arg1, %c0_i32 : i32, i32, i32
  }
  func.func @transform_5(%arg0: i32, %arg1: i32) -> (i32, i32, i32) {
    %c1_i32 = arith.constant 1 : i32
    %0 = arith.addi %arg1, %c1_i32 : i32
    %c0_i32 = arith.constant 0 : i32
    %c0_i32_0 = arith.constant 0 : i32
    return %arg0, %0, %c0_i32 : i32, i32, i32
  }
  func.func @transform_6(%arg0: i32, %arg1: i32) -> (i32, i32, i32) {
    %c2_i32 = arith.constant 2 : i32
    %0 = arith.addi %arg1, %c2_i32 : i32
    %c0_i32 = arith.constant 0 : i32
    %c0_i32_0 = arith.constant 0 : i32
    return %arg0, %0, %c0_i32 : i32, i32, i32
  }
  func.func @transform_7(%arg0: i32, %arg1: i32) -> (i32, i32, i32, i32) {
    %c0_i32 = arith.constant 0 : i32
    %c0_i32_0 = arith.constant 0 : i32
    %c0_i32_1 = arith.constant 0 : i32
    return %arg0, %arg1, %c0_i32, %c0_i32_0 : i32, i32, i32, i32
  }
  func.func @transform_8(%arg0: i32, %arg1: i32) -> (i32, i32, i32) {
    %c0_i32 = arith.constant 0 : i32
    %c0_i32_0 = arith.constant 0 : i32
    return %arg0, %arg1, %c0_i32 : i32, i32, i32
  }
}

</mosaic_0001>

<llo_original>
// kernel: tpu_custom_call.1
$region0: #{tpu_custom_call.1}
  #allocation0 [shape = 'u32[]', space=smem, size = 0x4, offset = 0x4, fixed_abs, tag = 'smem constant byte address 0x4 - core index']
  #allocation1 [shape = 'u32[72,128]{1,0:T(1,128)}', space=vmem, size = 0x9000, scoped, tag = 'internal scratch']
  %s0 = inlined_call_operand.hbm [shape: bf16[2,16,32], index: 0, kind: input, shape index: {}]
  %s1 = inlined_call_operand.hbm [shape: bf16[2,32,32], index: 1, kind: input, shape index: {}]
  %s2 = inlined_call_operand.hbm [shape: bf16[2,32,32], index: 2, kind: input, shape index: {}]
  %s3 = inlined_call_operand.hbm [shape: bf16[2,32,32], index: 3, kind: input, shape index: {}]
  %s4 = inlined_call_operand.hbm [shape: bf16[2,32,32], index: 4, kind: input, shape index: {}]
  %s5 = inlined_call_operand.hbm [shape: bf16[2,32,32], index: 5, kind: input, shape index: {}]
  %s6 = inlined_call_operand.hbm [shape: bf16[2,32,32], index: 6, kind: input, shape index: {}]
  %s7 = inlined_call_operand.vmem [shape: f32[2,2,1,24], index: 7, kind: input, shape index: {}]
  %s8 = inlined_call_operand.hbm [shape: f32[2,16,32], index: 8, kind: output, shape index: {}]
  %s9 = sld [smem:[#allocation0]]
  $region93: #{tpu_custom_call.1} parent=0
    _
  %s11 = ssub.s32 1, %s9
  %s12 = scalar_select 0, %s11, %s9
  $region1: #{tpu_custom_call.1} parent=0
    #allocation2 [shape = 'u8[4096]{0}', space=vmem, size = 0x1000, scoped, tag = 'input window, operand 0']
    #allocation3 [shape = 's32[2]{0}', space=sflag, size = 0x8, scoped, tag = 'scoped memory for tpu_custom_call.1']
    #allocation4 [shape = 's32[2]{0}', space=sflag, size = 0x8, scoped, tag = 'scoped memory for tpu_custom_call.1']
    #allocation5 [shape = 'u8[4096]{0}', space=vmem, size = 0x1000, scoped, tag = 'input window, operand 1']
    #allocation6 [shape = 's32[2]{0}', space=sflag, size = 0x8, scoped, tag = 'scoped memory for tpu_custom_call.1']
    #allocation7 [shape = 'u8[4096]{0}', space=vmem, size = 0x1000, scoped, tag = 'input window, operand 2']
    #allocation8 [shape = 'u8[4096]{0}', space=vmem, size = 0x1000, scoped, tag = 'input window, operand 3']
    #allocation9 [shape = 's32[2]{0}', space=sflag, size = 0x8, scoped, tag = 'scoped memory for tpu_custom_call.1']
    #allocation10 [shape = 'u8[4096]{0}', space=vmem, size = 0x1000, scoped, tag = 'input window, operand 4']
    #allocation11 [shape = 'u8[4096]{0}', space=vmem, size = 0x1000, scoped, tag = 'input window, operand 5']
    #allocation12 [shape = 's32[2]{0}', space=sflag, size = 0x8, scoped, tag = 'scoped memory for tpu_custom_call.1']
    #allocation13 [shape = 'u8[4096]{0}', space=vmem, size = 0x1000, scoped, tag = 'input window, operand 6']
    #allocation14 [shape = 'u8[8192]{0}', space=vmem, size = 0x2000, scoped, tag = 'output window, operand 0']
    %13 = vsyncpa [#allocation3], 0
    %s14 = scalar_lea.sflag [#allocation3], 1
    %15 = vsyncpa %s14, 0
    %16 = vsyncpa [#allocation6], 0
    %s17 = scalar_lea.sflag [#allocation6], 1
    %18 = vsyncpa %s17, 0
    %19 = vsyncpa [#allocation9], 0
    %s20 = scalar_lea.sflag [#allocation9], 1
    %21 = vsyncpa %s20, 0
    %22 = vsyncpa [#allocation12], 0
    %s23 = scalar_lea.sflag [#allocation12], 1
    %24 = vsyncpa %s23, 0
    %25 = vsyncpa [#allocation4], 0
    %s26 = scalar_lea.sflag [#allocation4], 1
    %27 = vsyncpa %s26, 0
    loop: start=0, step=1, limit=6
    $region2: #{tpu_custom_call.1} parent=1 // loop_pre_header
      _
    $region3: #{tpu_custom_call.1} parent=1 // loop_header
      %s29 = sphi 0, %s33
      %p30 = scmp.ge.s32.totalorder %s29, 6
      %s36 = sphi 0, %s48
      %s37 = sphi 0, %s44
      %s38 = sphi 0, %s36
      %s39 = sphi 0, %s37
      %s40 = sphi 0, %s38
      %s41 = sphi 0, %s39
      %s53 = sphi 0, %s55
      %s56 = sphi 0, %s53
      %s57 = sphi 0, %s56
      %s73 = sphi 0, %s57
      %s81 = sphi 0, %s83
      %s84 = sphi 0, %s81
      %s85 = sphi 0, %s84
      %s101 = sphi 0, %s85
      %s111 = sphi 0, %s113
      %s114 = sphi 0, %s111
      %s115 = sphi 0, %s114
      %s131 = sphi 0, %s115
      %s141 = sphi 0, %s143
      %s144 = sphi 0, %s141
      %s145 = sphi 0, %s144
      %s161 = sphi 0, %s145
      %s169 = sphi 0, %s171
      %s172 = sphi 0, %s169
      %s173 = sphi 0, %s172
      %s189 = sphi 0, %s173
      %s199 = sphi 0, %s201
      %s202 = sphi 0, %s199
      %s203 = sphi 0, %s202
      %s219 = sphi 0, %s203
      %s229 = sphi 0, %s231
      %s232 = sphi 0, %s229
      %s233 = sphi 0, %s232
      %s249 = sphi 0, %s233
      %s257 = sphi 0, %s259
      %s260 = sphi 0, %s257
      %s261 = sphi 0, %s260
      %s277 = sphi 0, %s261
      %s285 = sphi 0, %s287
      %s288 = sphi 0, %s285
      %s289 = sphi 0, %s288
      %s305 = sphi 0, %s289
    $region4: #{tpu_custom_call.1} parent=1 // loop_header_branch
      %32 = sbr.rel (%p30) target = $region8
    $region5: #{tpu_custom_call.1} parent=1 // loop_body
      %s34 = ssub.s32 %s29, 1
      %s35 = ssub.s32 %s29, 2
      %s42 = sadd.s32 1, %s37
      %p43 = scmp.ge.s32.totalorder %s42, 2
      %s44 = scalar_select %p43, 0, %s42
      %s45 = sadd.s32 1, %s36
      %s46 = scalar_select %p43, %s45, %s36
      %p47 = scmp.ge.s32.totalorder %s46, 2
      %s48 = scalar_select %p47, 0, %s46
      %s49 = ssub.s32 %s36, %s48
      %s50 = ssub.s32 %s37, %s44
      %s51 = sor.u32 %s49, %s50
      %p52 = scmp.eq.s32.totalorder %s51, 0
      %s54 = sadd.s32 %s53, 1
      %s55 = scalar_select %p52, %s53, %s54
      %p58 = pneg %p52
      %p59 = scmp.eq.s32.totalorder %s29, 3
      %p60 = por %p58, %p59
      %p61 = scmp.ne.s32.totalorder %s53, %s56
      %p62 = scmp.eq.s32.totalorder %s29, 0
      %p63 = por %p61, %p62
      %p64 = scmp.ne.s32.totalorder %s53, %s56
      %p65 = scmp.eq.s32.totalorder %s34, 3
      %p66 = por %p64, %p65
      %p67 = scmp.ne.s32.totalorder %s56, %s57
      %p68 = scmp.eq.s32.totalorder %s34, 0
      %p69 = por %p67, %p68
      %p70 = scmp.ne.s32.totalorder %s56, %s57
      %p71 = scmp.eq.s32.totalorder %s35, 3
      %p72 = por %p70, %p71
      %p74 = scmp.ne.s32.totalorder %s57, %s73
      %p75 = scmp.eq.s32.totalorder %s35, 0
      %p76 = por %p74, %p75
      %s77 = ssub.s32 %s36, %s48
      %s78 = ssub.s32 %s37, %s44
      %s79 = sor.u32 %s77, %s78
      %p80 = scmp.eq.s32.totalorder %s79, 0
      %s82 = sadd.s32 %s81, 1
      %s83 = scalar_select %p80, %s81, %s82
      %p86 = pneg %p80
      %p87 = scmp.eq.s32.totalorder %s29, 3
      %p88 = por %p86, %p87
      %p89 = scmp.ne.s32.totalorder %s81, %s84
      %p90 = scmp.eq.s32.totalorder %s29, 0
      %p91 = por %p89, %p90
      %p92 = scmp.ne.s32.totalorder %s81, %s84
      %p93 = scmp.eq.s32.totalorder %s34, 3
      %p94 = por %p92, %p93
      %p95 = scmp.ne.s32.totalorder %s84, %s85
      %p96 = scmp.eq.s32.totalorder %s34, 0
      %p97 = por %p95, %p96
      %p98 = scmp.ne.s32.totalorder %s84, %s85
      %p99 = scmp.eq.s32.totalorder %s35, 3
      %p100 = por %p98, %p99
      %p102 = scmp.ne.s32.totalorder %s85, %s101
      %p103 = scmp.eq.s32.totalorder %s35, 0
      %p104 = por %p102, %p103
      %s105 = sadd.s32 %s37, 1
      %s106 = sadd.s32 %s44, 1
      %s107 = ssub.s32 %s36, %s48
      %s108 = ssub.s32 %s105, %s106
      %s109 = sor.u32 %s107, %s108
      %p110 = scmp.eq.s32.totalorder %s109, 0
      %s112 = sadd.s32 %s111, 1
      %s113 = scalar_select %p110, %s111, %s112
      %p116 = pneg %p110
      %p117 = scmp.eq.s32.totalorder %s29, 3
      %p118 = por %p116, %p117
      %p119 = scmp.ne.s32.totalorder %s111, %s114
      %p120 = scmp.eq.s32.totalorder %s29, 0
      %p121 = por %p119, %p120
      %p122 = scmp.ne.s32.totalorder %s111, %s114
      %p123 = scmp.eq.s32.totalorder %s34, 3
      %p124 = por %p122, %p123
      %p125 = scmp.ne.s32.totalorder %s114, %s115
      %p126 = scmp.eq.s32.totalorder %s34, 0
      %p127 = por %p125, %p126
      %p128 = scmp.ne.s32.totalorder %s114, %s115
      %p129 = scmp.eq.s32.totalorder %s35, 3
      %p130 = por %p128, %p129
      %p132 = scmp.ne.s32.totalorder %s115, %s131
      %p133 = scmp.eq.s32.totalorder %s35, 0
      %p134 = por %p132, %p133
      %s135 = sadd.s32 %s37, 2
      %s136 = sadd.s32 %s44, 2
      %s137 = ssub.s32 %s36, %s48
      %s138 = ssub.s32 %s135, %s136
      %s139 = sor.u32 %s137, %s138
      %p140 = scmp.eq.s32.totalorder %s139, 0
      %s142 = sadd.s32 %s141, 1
      %s143 = scalar_select %p140, %s141, %s142
      %p146 = pneg %p140
      %p147 = scmp.eq.s32.totalorder %s29, 3
      %p148 = por %p146, %p147
      %p149 = scmp.ne.s32.totalorder %s141, %s144
      %p150 = scmp.eq.s32.totalorder %s29, 0
      %p151 = por %p149, %p150
      %p152 = scmp.ne.s32.totalorder %s141, %s144
      %p153 = scmp.eq.s32.totalorder %s34, 3
      %p154 = por %p152, %p153
      %p155 = scmp.ne.s32.totalorder %s144, %s145
      %p156 = scmp.eq.s32.totalorder %s34, 0
      %p157 = por %p155, %p156
      %p158 = scmp.ne.s32.totalorder %s144, %s145
      %p159 = scmp.eq.s32.totalorder %s35, 3
      %p160 = por %p158, %p159
      %p162 = scmp.ne.s32.totalorder %s145, %s161
      %p163 = scmp.eq.s32.totalorder %s35, 0
      %p164 = por %p162, %p163
      %s165 = ssub.s32 %s36, %s48
      %s166 = ssub.s32 %s37, %s44
      %s167 = sor.u32 %s165, %s166
      %p168 = scmp.eq.s32.totalorder %s167, 0
      %s170 = sadd.s32 %s169, 1
      %s171 = scalar_select %p168, %s169, %s170
      %p174 = pneg %p168
      %p175 = scmp.eq.s32.totalorder %s29, 3
      %p176 = por %p174, %p175
      %p177 = scmp.ne.s32.totalorder %s169, %s172
      %p178 = scmp.eq.s32.totalorder %s29, 0
      %p179 = por %p177, %p178
      %p180 = scmp.ne.s32.totalorder %s169, %s172
      %p181 = scmp.eq.s32.totalorder %s34, 3
      %p182 = por %p180, %p181
      %p183 = scmp.ne.s32.totalorder %s172, %s173
      %p184 = scmp.eq.s32.totalorder %s34, 0
      %p185 = por %p183, %p184
      %p186 = scmp.ne.s32.totalorder %s172, %s173
      %p187 = scmp.eq.s32.totalorder %s35, 3
      %p188 = por %p186, %p187
      %p190 = scmp.ne.s32.totalorder %s173, %s189
      %p191 = scmp.eq.s32.totalorder %s35, 0
      %p192 = por %p190, %p191
      %s193 = sadd.s32 %s37, 1
      %s194 = sadd.s32 %s44, 1
      %s195 = ssub.s32 %s36, %s48
      %s196 = ssub.s32 %s193, %s194
      %s197 = sor.u32 %s195, %s196
      %p198 = scmp.eq.s32.totalorder %s197, 0
      %s200 = sadd.s32 %s199, 1
      %s201 = scalar_select %p198, %s199, %s200
      %p204 = pneg %p198
      %p205 = scmp.eq.s32.totalorder %s29, 3
      %p206 = por %p204, %p205
      %p207 = scmp.ne.s32.totalorder %s199, %s202
      %p208 = scmp.eq.s32.totalorder %s29, 0
      %p209 = por %p207, %p208
      %p210 = scmp.ne.s32.totalorder %s199, %s202
      %p211 = scmp.eq.s32.totalorder %s34, 3
      %p212 = por %p210, %p211
      %p213 = scmp.ne.s32.totalorder %s202, %s203
      %p214 = scmp.eq.s32.totalorder %s34, 0
      %p215 = por %p213, %p214
      %p216 = scmp.ne.s32.totalorder %s202, %s203
      %p217 = scmp.eq.s32.totalorder %s35, 3
      %p218 = por %p216, %p217
      %p220 = scmp.ne.s32.totalorder %s203, %s219
      %p221 = scmp.eq.s32.totalorder %s35, 0
      %p222 = por %p220, %p221
      %s223 = sadd.s32 %s37, 2
      %s224 = sadd.s32 %s44, 2
      %s225 = ssub.s32 %s36, %s48
      %s226 = ssub.s32 %s223, %s224
      %s227 = sor.u32 %s225, %s226
      %p228 = scmp.eq.s32.totalorder %s227, 0
      %s230 = sadd.s32 %s229, 1
      %s231 = scalar_select %p228, %s229, %s230
      %p234 = pneg %p228
      %p235 = scmp.eq.s32.totalorder %s29, 3
      %p236 = por %p234, %p235
      %p237 = scmp.ne.s32.totalorder %s229, %s232
      %p238 = scmp.eq.s32.totalorder %s29, 0
      %p239 = por %p237, %p238
      %p240 = scmp.ne.s32.totalorder %s229, %s232
      %p241 = scmp.eq.s32.totalorder %s34, 3
      %p242 = por %p240, %p241
      %p243 = scmp.ne.s32.totalorder %s232, %s233
      %p244 = scmp.eq.s32.totalorder %s34, 0
      %p245 = por %p243, %p244
      %p246 = scmp.ne.s32.totalorder %s232, %s233
      %p247 = scmp.eq.s32.totalorder %s35, 3
      %p248 = por %p246, %p247
      %p250 = scmp.ne.s32.totalorder %s233, %s249
      %p251 = scmp.eq.s32.totalorder %s35, 0
      %p252 = por %p250, %p251
      %s253 = ssub.s32 %s36, %s48
      %s254 = ssub.s32 %s37, %s44
      %s255 = sor.u32 %s253, %s254
      %p256 = scmp.eq.s32.totalorder %s255, 0
      %s258 = sadd.s32 %s257, 1
      %s259 = scalar_select %p256, %s257, %s258
      %p262 = pneg %p256
      %p263 = scmp.eq.s32.totalorder %s29, 3
      %p264 = por %p262, %p263
      %p265 = scmp.ne.s32.totalorder %s257, %s260
      %p266 = scmp.eq.s32.totalorder %s29, 0
      %p267 = por %p265, %p266
      %p268 = scmp.ne.s32.totalorder %s257, %s260
      %p269 = scmp.eq.s32.totalorder %s34, 3
      %p270 = por %p268, %p269
      %p271 = scmp.ne.s32.totalorder %s260, %s261
      %p272 = scmp.eq.s32.totalorder %s34, 0
      %p273 = por %p271, %p272
      %p274 = scmp.ne.s32.totalorder %s260, %s261
      %p275 = scmp.eq.s32.totalorder %s35, 3
      %p276 = por %p274, %p275
      %p278 = scmp.ne.s32.totalorder %s261, %s277
      %p279 = scmp.eq.s32.totalorder %s35, 0
      %p280 = por %p278, %p279
      %s281 = ssub.s32 %s36, %s48
      %s282 = ssub.s32 %s37, %s44
      %s283 = sor.u32 %s281, %s282
      %p284 = scmp.eq.s32.totalorder %s283, 0
      %s286 = sadd.s32 %s285, 1
      %s287 = scalar_select %p284, %s285, %s286
      %p290 = pneg %p284
      %p291 = scmp.eq.s32.totalorder %s29, 3
      %p292 = por %p290, %p291
      %p293 = scmp.ne.s32.totalorder %s285, %s288
      %p294 = scmp.eq.s32.totalorder %s29, 0
      %p295 = por %p293, %p294
      %p296 = scmp.ne.s32.totalorder %s285, %s288
      %p297 = scmp.eq.s32.totalorder %s34, 3
      %p298 = por %p296, %p297
      %p299 = scmp.ne.s32.totalorder %s288, %s289
      %p300 = scmp.eq.s32.totalorder %s34, 0
      %p301 = por %p299, %p300
      %p302 = scmp.ne.s32.totalorder %s288, %s289
      %p303 = scmp.eq.s32.totalorder %s35, 3
      %p304 = por %p302, %p303
      %p306 = scmp.ne.s32.totalorder %s289, %s305
      %p307 = scmp.eq.s32.totalorder %s35, 0
      %p308 = por %p306, %p307
      %p309 = scmp.le.s32.totalorder 1, %s29
      %p310 = scmp.lt.s32.totalorder %s29, 5
      %p311 = pnand %p309, %p310
      %p312 = pneg %p311
      // Predicated region
      $region9: #{tpu_custom_call.1} parent=5 // pred_check
        _
      $region10: #{tpu_custom_call.1} parent=5 // pred_check_branch
        %314 = sbr.rel (%p311) target = $region12
      $region11: #{tpu_custom_call.1} parent=5 // pred_region
        %s315 = ssub.s32 %s29, 1
      $region12: #{tpu_custom_call.1} parent=5 // pred_fallthru
        _
      %p316 = scmp.lt.s32.totalorder %s29, 4
      // Predicated region
      $region13: #{tpu_custom_call.1} parent=5 // pred_check
        %p317 = pneg %p316
      $region14: #{tpu_custom_call.1} parent=5 // pred_check_branch
        %319 = sbr.rel (%p317) target = $region16
      $region15: #{tpu_custom_call.1} parent=5 // pred_region
        // Predicated region
        $region17: #{tpu_custom_call.1} parent=15 // pred_check
          %p320 = pneg %p63
        $region18: #{tpu_custom_call.1} parent=15 // pred_check_branch
          %322 = sbr.rel (%p320) target = $region20
        $region19: #{tpu_custom_call.1} parent=15 // pred_region
          %s323 = sand.u32 %s53, 1
          %s324 = scalar_lea.sflag [#allocation3], %s323
          %s325 = sand.u32 %s53, 1
          %s326 = smul.addr %s325, 4
          %s327 = scalar_lea.vmem [#allocation2], %s326
          %329 = vsyncadd %s324, 0
          %s330 = smul.addr %s36, 2
          %s331 = sadd.s32 %s37, %s330
          %s332 = smul.addr %s331, 4
          %s333 = scalar_lea.hbm %s0, %s332
          %s335 = sshll.u32 %s333, 4
          %s336 = int_to_ptr.hbm [resolvable:$true] %s335
          %s337 = sshll.u32 %s327, 4
          %s338 = int_to_ptr.vmem [resolvable:$true] %s337
          %340 = dma.hbm_to_vmem [thread:$0]  %s336, 64, %s338, %s324
        $region20: #{tpu_custom_call.1} parent=15 // pred_fallthru
          _
        // Predicated region
        $region21: #{tpu_custom_call.1} parent=15 // pred_check
          %p341 = pneg %p91
        $region22: #{tpu_custom_call.1} parent=15 // pred_check_branch
          %343 = sbr.rel (%p341) target = $region24
        $region23: #{tpu_custom_call.1} parent=15 // pred_region
          %s344 = sand.u32 %s29, 1
          %s345 = scalar_lea.sflag [#allocation6], %s344
          %s346 = sand.u32 %s81, 1
          %s347 = smul.addr %s346, 4
          %s348 = scalar_lea.vmem [#allocation5], %s347
          %350 = vsyncadd %s345, 0
          %s351 = smul.addr %s36, 4
          %s352 = sadd.s32 %s37, %s351
          %s353 = smul.addr %s352, 4
          %s354 = scalar_lea.hbm %s1, %s353
          %s356 = sshll.u32 %s354, 4
          %s357 = int_to_ptr.hbm [resolvable:$true] %s356
          %s358 = sshll.u32 %s348, 4
          %s359 = int_to_ptr.vmem [resolvable:$true] %s358
          %361 = dma.hbm_to_vmem [thread:$0]  %s357, 64, %s359, %s345
        $region24: #{tpu_custom_call.1} parent=15 // pred_fallthru
          _
        // Predicated region
        $region25: #{tpu_custom_call.1} parent=15 // pred_check
          %p362 = pneg %p121
        $region26: #{tpu_custom_call.1} parent=15 // pred_check_branch
          %364 = sbr.rel (%p362) target = $region28
        $region27: #{tpu_custom_call.1} parent=15 // pred_region
          %s365 = sand.u32 %s29, 1
          %s366 = scalar_lea.sflag [#allocation6], %s365
          %s367 = sand.u32 %s111, 1
          %s368 = smul.addr %s367, 4
          %s369 = scalar_lea.vmem [#allocation7], %s368
          %s370 = sadd.s32 %s37, 1
          %372 = vsyncadd %s366, 0
          %s373 = smul.addr %s36, 4
          %s374 = sadd.s32 %s370, %s373
          %s375 = smul.addr %s374, 4
          %s376 = scalar_lea.hbm %s2, %s375
          %s378 = sshll.u32 %s376, 4
          %s379 = int_to_ptr.hbm [resolvable:$true] %s378
          %s380 = sshll.u32 %s369, 4
          %s381 = int_to_ptr.vmem [resolvable:$true] %s380
          %383 = dma.hbm_to_vmem [thread:$0]  %s379, 64, %s381, %s366
        $region28: #{tpu_custom_call.1} parent=15 // pred_fallthru
          _
        // Predicated region
        $region29: #{tpu_custom_call.1} parent=15 // pred_check
          %p384 = pneg %p151
        $region30: #{tpu_custom_call.1} parent=15 // pred_check_branch
          %386 = sbr.rel (%p384) target = $region32
        $region31: #{tpu_custom_call.1} parent=15 // pred_region
          %s387 = sand.u32 %s29, 1
          %s388 = scalar_lea.sflag [#allocation9], %s387
          %s389 = sand.u32 %s141, 1
          %s390 = smul.addr %s389, 4
          %s391 = scalar_lea.vmem [#allocation8], %s390
          %s392 = sadd.s32 %s37, 2
          %394 = vsyncadd %s388, 0
          %s395 = smul.addr %s36, 4
          %s396 = sadd.s32 %s392, %s395
          %s397 = smul.addr %s396, 4
          %s398 = scalar_lea.hbm %s3, %s397
          %s400 = sshll.u32 %s398, 4
          %s401 = int_to_ptr.hbm [resolvable:$true] %s400
          %s402 = sshll.u32 %s391, 4
          %s403 = int_to_ptr.vmem [resolvable:$true] %s402
          %405 = dma.hbm_to_vmem [thread:$0]  %s401, 64, %s403, %s388
        $region32: #{tpu_custom_call.1} parent=15 // pred_fallthru
          _
        // Predicated region
        $region33: #{tpu_custom_call.1} parent=15 // pred_check
          %p406 = pneg %p179
        $region34: #{tpu_custom_call.1} parent=15 // pred_check_branch
          %408 = sbr.rel (%p406) target = $region36
        $region35: #{tpu_custom_call.1} parent=15 // pred_region
          %s409 = sand.u32 %s29, 1
          %s410 = scalar_lea.sflag [#allocation9], %s409
          %s411 = sand.u32 %s169, 1
          %s412 = smul.addr %s411, 4
          %s413 = scalar_lea.vmem [#allocation10], %s412
          %415 = vsyncadd %s410, 0
          %s416 = smul.addr %s36, 4
          %s417 = sadd.s32 %s37, %s416
          %s418 = smul.addr %s417, 4
          %s419 = scalar_lea.hbm %s4, %s418
          %s421 = sshll.u32 %s419, 4
          %s422 = int_to_ptr.hbm [resolvable:$true] %s421
          %s423 = sshll.u32 %s413, 4
          %s424 = int_to_ptr.vmem [resolvable:$true] %s423
          %426 = dma.hbm_to_vmem [thread:$0]  %s422, 64, %s424, %s410
        $region36: #{tpu_custom_call.1} parent=15 // pred_fallthru
          _
        // Predicated region
        $region37: #{tpu_custom_call.1} parent=15 // pred_check
          %p427 = pneg %p209
        $region38: #{tpu_custom_call.1} parent=15 // pred_check_branch
          %429 = sbr.rel (%p427) target = $region40
        $region39: #{tpu_custom_call.1} parent=15 // pred_region
          %s430 = sand.u32 %s29, 1
          %s431 = scalar_lea.sflag [#allocation12], %s430
          %s432 = sand.u32 %s199, 1
          %s433 = smul.addr %s432, 4
          %s434 = scalar_lea.vmem [#allocation11], %s433
          %s435 = sadd.s32 %s37, 1
          %437 = vsyncadd %s431, 0
          %s438 = smul.addr %s36, 4
          %s439 = sadd.s32 %s435, %s438
          %s440 = smul.addr %s439, 4
          %s441 = scalar_lea.hbm %s5, %s440
          %s443 = sshll.u32 %s441, 4
          %s444 = int_to_ptr.hbm [resolvable:$true] %s443
          %s445 = sshll.u32 %s434, 4
          %s446 = int_to_ptr.vmem [resolvable:$true] %s445
          %448 = dma.hbm_to_vmem [thread:$0]  %s444, 64, %s446, %s431
        $region40: #{tpu_custom_call.1} parent=15 // pred_fallthru
          _
        // Predicated region
        $region41: #{tpu_custom_call.1} parent=15 // pred_check
          %p449 = pneg %p239
        $region42: #{tpu_custom_call.1} parent=15 // pred_check_branch
          %451 = sbr.rel (%p449) target = $region44
        $region43: #{tpu_custom_call.1} parent=15 // pred_region
          %s452 = sand.u32 %s29, 1
          %s453 = scalar_lea.sflag [#allocation12], %s452
          %s454 = sand.u32 %s229, 1
          %s455 = smul.addr %s454, 4
          %s456 = scalar_lea.vmem [#allocation13], %s455
          %s457 = sadd.s32 %s37, 2
          %459 = vsyncadd %s453, 0
          %s460 = smul.addr %s36, 4
          %s461 = sadd.s32 %s457, %s460
          %s462 = smul.addr %s461, 4
          %s463 = scalar_lea.hbm %s6, %s462
          %s465 = sshll.u32 %s463, 4
          %s466 = int_to_ptr.hbm [resolvable:$true] %s465
          %s467 = sshll.u32 %s456, 4
          %s468 = int_to_ptr.vmem [resolvable:$true] %s467
          %470 = dma.hbm_to_vmem [thread:$0]  %s466, 64, %s468, %s453
        $region44: #{tpu_custom_call.1} parent=15 // pred_fallthru
          _
        // Predicated region
        $region45: #{tpu_custom_call.1} parent=15 // pred_check
          %p471 = pneg %p267
        $region46: #{tpu_custom_call.1} parent=15 // pred_check_branch
          %473 = sbr.rel (%p471) target = $region48
        $region47: #{tpu_custom_call.1} parent=15 // pred_region
          %p474 = scmp.lt.s32.totalorder %s36, 1
          %s475 = scalar_select %p474, %s36, 1
          %p476 = scmp.lt.s32.totalorder %s37, 1
          %s477 = scalar_select %p476, %s37, 1
          %s478 = smul.addr %s475, 2
          %s479 = sadd.s32 %s477, %s478
          %s480 = scalar_lea.vmem %s7, %s479
        $region48: #{tpu_custom_call.1} parent=15 // pred_fallthru
          _
      $region16: #{tpu_custom_call.1} parent=5 // pred_fallthru
        _
      %p481 = scmp.le.s32.totalorder 1, %s29
      %p482 = scmp.lt.s32.totalorder %s29, 5
      %p483 = pnand %p481, %p482
      %p484 = pneg %p483
      // Predicated region
      $region49: #{tpu_custom_call.1} parent=5 // pred_check
        _
      $region50: #{tpu_custom_call.1} parent=5 // pred_check_branch
        %486 = sbr.rel (%p483) target = $region52
      $region51: #{tpu_custom_call.1} parent=5 // pred_region
        %s487 = ssub.s32 %s29, 1
        %s488 = sand.u32 %s56, 1
        %s489 = scalar_lea.sflag [#allocation3], %s488
        %s490 = sand.u32 %s56, 1
        %s491 = smul.addr %s490, 4
        %s492 = scalar_lea.vmem [#allocation2], %s491
        // Predicated region
        $region53: #{tpu_custom_call.1} parent=51 // pred_check
          %p493 = pneg %p69
        $region54: #{tpu_custom_call.1} parent=51 // pred_check_branch
          %495 = sbr.rel (%p493) target = $region56
        $region55: #{tpu_custom_call.1} parent=51 // pred_region
          %497 = dma.done %s489, 64
        $region56: #{tpu_custom_call.1} parent=51 // pred_fallthru
          _
        %s498 = sand.u32 %s34, 1
        %s499 = scalar_lea.sflag [#allocation6], %s498
        %s500 = sand.u32 %s84, 1
        %s501 = smul.addr %s500, 4
        %s502 = scalar_lea.vmem [#allocation5], %s501
        // Predicated region
        $region57: #{tpu_custom_call.1} parent=51 // pred_check
          %p503 = pneg %p97
        $region58: #{tpu_custom_call.1} parent=51 // pred_check_branch
          %505 = sbr.rel (%p503) target = $region60
        $region59: #{tpu_custom_call.1} parent=51 // pred_region
          %507 = dma.done %s499, 64
        $region60: #{tpu_custom_call.1} parent=51 // pred_fallthru
          _
        %s508 = sand.u32 %s34, 1
        %s509 = scalar_lea.sflag [#allocation6], %s508
        %s510 = sand.u32 %s114, 1
        %s511 = smul.addr %s510, 4
        %s512 = scalar_lea.vmem [#allocation7], %s511
        // Predicated region
        $region61: #{tpu_custom_call.1} parent=51 // pred_check
          %p513 = pneg %p127
        $region62: #{tpu_custom_call.1} parent=51 // pred_check_branch
          %515 = sbr.rel (%p513) target = $region64
        $region63: #{tpu_custom_call.1} parent=51 // pred_region
          %517 = dma.done %s509, 64
        $region64: #{tpu_custom_call.1} parent=51 // pred_fallthru
          _
        %s518 = sand.u32 %s34, 1
        %s519 = scalar_lea.sflag [#allocation9], %s518
        %s520 = sand.u32 %s144, 1
        %s521 = smul.addr %s520, 4
        %s522 = scalar_lea.vmem [#allocation8], %s521
        // Predicated region
        $region65: #{tpu_custom_call.1} parent=51 // pred_check
          %p523 = pneg %p157
        $region66: #{tpu_custom_call.1} parent=51 // pred_check_branch
          %525 = sbr.rel (%p523) target = $region68
        $region67: #{tpu_custom_call.1} parent=51 // pred_region
          %527 = dma.done %s519, 64
        $region68: #{tpu_custom_call.1} parent=51 // pred_fallthru
          _
        %s528 = sand.u32 %s34, 1
        %s529 = scalar_lea.sflag [#allocation9], %s528
        %s530 = sand.u32 %s172, 1
        %s531 = smul.addr %s530, 4
        %s532 = scalar_lea.vmem [#allocation10], %s531
        // Predicated region
        $region69: #{tpu_custom_call.1} parent=51 // pred_check
          %p533 = pneg %p185
        $region70: #{tpu_custom_call.1} parent=51 // pred_check_branch
          %535 = sbr.rel (%p533) target = $region72
        $region71: #{tpu_custom_call.1} parent=51 // pred_region
          %537 = dma.done %s529, 64
        $region72: #{tpu_custom_call.1} parent=51 // pred_fallthru
          _
        %s538 = sand.u32 %s34, 1
        %s539 = scalar_lea.sflag [#allocation12], %s538
        %s540 = sand.u32 %s202, 1
        %s541 = smul.addr %s540, 4
        %s542 = scalar_lea.vmem [#allocation11], %s541
        // Predicated region
        $region73: #{tpu_custom_call.1} parent=51 // pred_check
          %p543 = pneg %p215
        $region74: #{tpu_custom_call.1} parent=51 // pred_check_branch
          %545 = sbr.rel (%p543) target = $region76
        $region75: #{tpu_custom_call.1} parent=51 // pred_region
          %547 = dma.done %s539, 64
        $region76: #{tpu_custom_call.1} parent=51 // pred_fallthru
          _
        %s548 = sand.u32 %s34, 1
        %s549 = scalar_lea.sflag [#allocation12], %s548
        %s550 = sand.u32 %s232, 1
        %s551 = smul.addr %s550, 4
        %s552 = scalar_lea.vmem [#allocation13], %s551
        // Predicated region
        $region77: #{tpu_custom_call.1} parent=51 // pred_check
          %p553 = pneg %p245
        $region78: #{tpu_custom_call.1} parent=51 // pred_check_branch
          %555 = sbr.rel (%p553) target = $region80
        $region79: #{tpu_custom_call.1} parent=51 // pred_region
          %557 = dma.done %s549, 64
        $region80: #{tpu_custom_call.1} parent=51 // pred_fallthru
          _
        %s558 = sand.u32 %s56, 1
        %s559 = scalar_lea.sflag [#allocation3], %s558
        %s560 = sand.u32 %s56, 1
        %s561 = smul.addr %s560, 4
        %s562 = scalar_lea.vmem [#allocation2], %s561
        %p563 = pneg %p69
        %p564 = pneg %p66
        %s565 = sand.u32 %s34, 1
        %s566 = scalar_lea.sflag [#allocation6], %s565
        %s567 = sand.u32 %s84, 1
        %s568 = smul.addr %s567, 4
        %s569 = scalar_lea.vmem [#allocation5], %s568
        %p570 = pneg %p97
        %p571 = pneg %p94
        %s572 = sand.u32 %s34, 1
        %s573 = scalar_lea.sflag [#allocation6], %s572
        %s574 = sand.u32 %s114, 1
        %s575 = smul.addr %s574, 4
        %s576 = scalar_lea.vmem [#allocation7], %s575
        %p577 = pneg %p127
        %p578 = pneg %p124
        %s579 = sand.u32 %s34, 1
        %s580 = scalar_lea.sflag [#allocation9], %s579
        %s581 = sand.u32 %s144, 1
        %s582 = smul.addr %s581, 4
        %s583 = scalar_lea.vmem [#allocation8], %s582
        %p584 = pneg %p157
        %p585 = pneg %p154
        %s586 = sand.u32 %s34, 1
        %s587 = scalar_lea.sflag [#allocation9], %s586
        %s588 = sand.u32 %s172, 1
        %s589 = smul.addr %s588, 4
        %s590 = scalar_lea.vmem [#allocation10], %s589
        %p591 = pneg %p185
        %p592 = pneg %p182
        %s593 = sand.u32 %s34, 1
        %s594 = scalar_lea.sflag [#allocation12], %s593
        %s595 = sand.u32 %s202, 1
        %s596 = smul.addr %s595, 4
        %s597 = scalar_lea.vmem [#allocation11], %s596
        %p598 = pneg %p215
        %p599 = pneg %p212
        %s600 = sand.u32 %s34, 1
        %s601 = scalar_lea.sflag [#allocation12], %s600
        %s602 = sand.u32 %s232, 1
        %s603 = smul.addr %s602, 4
        %s604 = scalar_lea.vmem [#allocation13], %s603
        %p605 = pneg %p245
        %p606 = pneg %p242
        %p607 = scmp.lt.s32.totalorder %s38, 1
        %s608 = scalar_select %p607, %s38, 1
        %p609 = scmp.lt.s32.totalorder %s39, 1
        %s610 = scalar_select %p609, %s39, 1
        %s611 = smul.addr %s608, 2
        %s612 = sadd.s32 %s610, %s611
        %s613 = scalar_lea.vmem %s7, %s612
        %p614 = pneg %p273
        %p615 = pneg %p270
        %p616 = pneg %p301
        %p617 = pneg %p298
        %s618 = sand.u32 %s288, 1
        %s619 = scalar_lea.sflag [#allocation4], %s618
        %s620 = sand.u32 %s288, 1
        %s621 = smul.addr %s620, 8
        %s622 = scalar_lea.vmem [#allocation14], %s621
        %s623 = sadd.s32 %s39, 1
        %s624 = sadd.s32 %s39, 2
        %s625 = sadd.s32 %s39, 1
        %s626 = sadd.s32 %s39, 2
        %p627 = scmp.lt.s32.totalorder %s38, 1
        %s628 = scalar_select %p627, %s38, 1
        %p629 = scmp.lt.s32.totalorder %s39, 1
        %s630 = scalar_select %p629, %s39, 1
        %s631 = smul.addr %s628, 2
        %s632 = sadd.s32 %s630, %s631
        %s633 = scalar_lea.vmem %s7, %s632
        %v635 = vld [vmem:[%s492] sm:$0xf]
        %v636 = vld [vmem:[%s502] sm:$0xf]
        %v637 = vld [vmem:[%s512] sm:$0xf]
        %v638 = vld [vmem:[%s522] sm:$0xf]
        %v640 = vunpack.c.l.b16 %v637
        %v641 = vpack.c.b16 %v640, %v640
        %vm642 = vcmask 1043456
        %v645 = vsel %vm642, %v636, %v641
        %v646 = vld [vmem:[%s532] sm:$0xf]
        %v647 = vld [vmem:[%s542] sm:$0xf]
        %v648 = vld [vmem:[%s552] sm:$0xf]
        %v650 = vunpack.c.l.b16 %v647
        %v651 = vpack.c.b16 %v650, %v650
        %v654 = vsel %vm642, %v646, %v651
        %v656 = vld [vmem:[%s633] sm:$0x1]
        %v657 = vlaneseq
        %v658 = vshrl.u32 %v657, 7
        %v659 = vlaneseq
        %v660 = vand.u32 %v659, 127
        %v661 = vadd.s32 %v658, 8
        %v662 = vsub.s32 %v661, %v660
        %vm663 = vcmp.lt.s32.totalorder %v662, 0
        %v664 = vsub.s32 0, %v662
        %v665 = vsel %vm663, %v664, %v662
        %vm666 = vcmp.le.s32.totalorder %v665, 4
        %v668 = vperm.slane %v656, 0
        %v670 = vsel %vm666, %v668, -1e+30
        %vm671 = vcmask 64512
        %v673 = vsel %vm671, %v635, 0
        %v675 = vsel %vm671, %v645, 0
        %v678 = vsel %vm671, %v638, 0
        %680 = vmatpush.bf16.xpose.msra.mxu0 0
        %681 = vmatpush.bf16.xpose.msra.mxu0 0
        %682 = vmatpush.bf16.xpose.msra.mxu0 0
        %683 = vmatpush.bf16.xpose.msra.mxu0 0
        %684 = vmatpush.bf16.xpose.msra.mxu0 0
        %685 = vmatpush.bf16.xpose.msra.mxu0 0
        %686 = vmatpush.bf16.xpose.msra.mxu0 %v678
        %687 = vmatpush.bf16.xpose.msra.mxu0 %v675
        %688 = vmatmul.bf16.gmra.mxu0 %v673
        %v689 = vpop.f32.mrf.mxu0
        %v690 = vadd.f32 %v670, %v689
        %v691 = vpop.f32.mrf.mxu0
        %692 = vdwg.mxu0
        %vm693 = vcmask 195584
        %v694 = vsel %vm693, %v690, -inf
        %695 = vmax.xlane.f32.xlu0 %v694
        %v696 = vpop.xlane.xlu0 %695
        %v697 = vsub.f32 %v690, %v696
        %v698 = vmul.f32 %v697, 1.442695
        %v699 = vpow.pop %v698
        %v700 = vsel %vm693, %v699, 0.0
        %701 = vadd.xlane.f32.xlu0 %v700
        %v702 = vpop.xlane.xlu0 %701
        %v703 = vrcp.pop %v702
        %v704 = vmul.f32 %v699, %v703
        %v705 = vpack.c.bf16 %v704, %v704
        %v707 = vsel %vm693, %v705, 0
        %v710 = vsel %vm642, %v648, 0
        %712 = vmatpush.bf16.msra.mxu0 0
        %713 = vmatpush.bf16.msra.mxu0 0
        %714 = vmatpush.bf16.msra.mxu0 0
        %715 = vmatpush.bf16.msra.mxu0 0
        %716 = vmatpush.bf16.msra.mxu0 0
        %717 = vmatpush.bf16.msra.mxu0 0
        %718 = vmatpush.bf16.msra.mxu0 %v710
        %719 = vmatpush.bf16.msra.mxu0 %v654
        %720 = vmatmul.bf16.gmra.mxu0 %v707
        %v721 = vpop.f32.mrf.mxu0
        %v722 = vadd.f32 0.0, %v721
        %v723 = vpop.f32.mrf.mxu0
        %724 = vdwg.mxu0
        %v726 = vunpack.c.l.b16 %v635
        %v727 = vpack.c.b16 %v726, %v726
        %728 = vrot.lane.b32.xlu0 %v727, 120
        %v729 = vpop.permute.xlu0 %728
        %732 = vrot.lane.b32.xlu0 %v645, 120
        %v733 = vpop.permute.xlu0 %732
        %734 = vrot.lane.b32.xlu0 %v638, 120
        %v735 = vpop.permute.xlu0 %734
        %v737 = vsel %vm671, %v729, 0
        %v740 = vsel %vm671, %v733, 0
        %v743 = vsel %vm671, %v735, 0
        %745 = vmatpush.bf16.xpose.msra.mxu0 0
        %746 = vmatpush.bf16.xpose.msra.mxu0 0
        %747 = vmatpush.bf16.xpose.msra.mxu0 0
        %748 = vmatpush.bf16.xpose.msra.mxu0 0
        %749 = vmatpush.bf16.xpose.msra.mxu0 0
        %750 = vmatpush.bf16.xpose.msra.mxu0 0
        %751 = vmatpush.bf16.xpose.msra.mxu0 %v743
        %752 = vmatpush.bf16.xpose.msra.mxu0 %v740
        %753 = vmatmul.bf16.gmra.mxu0 %v737
        %v754 = vpop.f32.mrf.mxu0
        %v755 = vadd.f32 %v670, %v754
        %v756 = vpop.f32.mrf.mxu0
        %757 = vdwg.mxu0
        %v758 = vsel %vm693, %v755, -inf
        %759 = vmax.xlane.f32.xlu0 %v758
        %v760 = vpop.xlane.xlu0 %759
        %v761 = vsub.f32 %v755, %v760
        %v762 = vmul.f32 %v761, 1.442695
        %v763 = vpow.pop %v762
        %v764 = vsel %vm693, %v763, 0.0
        %765 = vadd.xlane.f32.xlu0 %v764
        %v766 = vpop.xlane.xlu0 %765
        %v767 = vrcp.pop %v766
        %v768 = vmul.f32 %v763, %v767
        %v769 = vpack.c.bf16 %v768, %v768
        %772 = vrot.lane.b32.xlu0 %v654, 120
        %v773 = vpop.permute.xlu0 %772
        %774 = vrot.lane.b32.xlu0 %v648, 120
        %v775 = vpop.permute.xlu0 %774
        %v778 = vsel %vm693, %v769, 0
        %v781 = vsel %vm642, %v775, 0
        %783 = vmatpush.bf16.msra.mxu0 0
        %784 = vmatpush.bf16.msra.mxu0 0
        %785 = vmatpush.bf16.msra.mxu0 0
        %786 = vmatpush.bf16.msra.mxu0 0
        %787 = vmatpush.bf16.msra.mxu0 0
        %788 = vmatpush.bf16.msra.mxu0 0
        %789 = vmatpush.bf16.msra.mxu0 %v781
        %790 = vmatpush.bf16.msra.mxu0 %v773
        %791 = vmatmul.bf16.gmra.mxu0 %v778
        %v792 = vpop.f32.mrf.mxu0
        %v793 = vadd.f32 0.0, %v792
        %v794 = vpop.f32.mrf.mxu0
        %795 = vdwg.mxu0
        %796 = vrot.lane.b32.xlu0 %v727, 112
        %v797 = vpop.permute.xlu0 %796
        %798 = vrot.lane.b32.xlu0 %v645, 112
        %v799 = vpop.permute.xlu0 %798
        %800 = vrot.lane.b32.xlu0 %v638, 112
        %v801 = vpop.permute.xlu0 %800
        %v803 = vsel %vm671, %v797, 0
        %v806 = vsel %vm671, %v799, 0
        %v809 = vsel %vm671, %v801, 0
        %811 = vmatpush.bf16.xpose.msra.mxu0 0
        %812 = vmatpush.bf16.xpose.msra.mxu0 0
        %813 = vmatpush.bf16.xpose.msra.mxu0 0
        %814 = vmatpush.bf16.xpose.msra.mxu0 0
        %815 = vmatpush.bf16.xpose.msra.mxu0 0
        %816 = vmatpush.bf16.xpose.msra.mxu0 0
        %817 = vmatpush.bf16.xpose.msra.mxu0 %v809
        %818 = vmatpush.bf16.xpose.msra.mxu0 %v806
        %819 = vmatmul.bf16.gmra.mxu0 %v803
        %v820 = vpop.f32.mrf.mxu0
        %v821 = vadd.f32 %v670, %v820
        %v822 = vpop.f32.mrf.mxu0
        %823 = vdwg.mxu0
        %v824 = vsel %vm693, %v821, -inf
        %825 = vmax.xlane.f32.xlu0 %v824
        %v826 = vpop.xlane.xlu0 %825
        %v827 = vsub.f32 %v821, %v826
        %v828 = vmul.f32 %v827, 1.442695
        %v829 = vpow.pop %v828
        %v830 = vsel %vm693, %v829, 0.0
        %831 = vadd.xlane.f32.xlu0 %v830
        %v832 = vpop.xlane.xlu0 %831
        %v833 = vrcp.pop %v832
        %v834 = vmul.f32 %v829, %v833
        %v835 = vpack.c.bf16 %v834, %v834
        %836 = vrot.lane.b32.xlu0 %v654, 112
        %v837 = vpop.permute.xlu0 %836
        %838 = vrot.lane.b32.xlu0 %v648, 112
        %v839 = vpop.permute.xlu0 %838
        %v842 = vsel %vm693, %v835, 0
        %v845 = vsel %vm642, %v839, 0
        %847 = vmatpush.bf16.msra.mxu0 0
        %848 = vmatpush.bf16.msra.mxu0 0
        %849 = vmatpush.bf16.msra.mxu0 0
        %850 = vmatpush.bf16.msra.mxu0 0
        %851 = vmatpush.bf16.msra.mxu0 0
        %852 = vmatpush.bf16.msra.mxu0 0
        %853 = vmatpush.bf16.msra.mxu0 %v845
        %854 = vmatpush.bf16.msra.mxu0 %v837
        %855 = vmatmul.bf16.gmra.mxu0 %v842
        %v856 = vpop.f32.mrf.mxu0
        %v857 = vadd.f32 0.0, %v856
        %v858 = vpop.f32.mrf.mxu0
        %859 = vdwg.mxu0
        %860 = vrot.lane.b32.xlu0 %v727, 104
        %v861 = vpop.permute.xlu0 %860
        %862 = vrot.lane.b32.xlu0 %v645, 104
        %v863 = vpop.permute.xlu0 %862
        %864 = vrot.lane.b32.xlu0 %v638, 104
        %v865 = vpop.permute.xlu0 %864
        %v867 = vsel %vm671, %v861, 0
        %v870 = vsel %vm671, %v863, 0
        %v873 = vsel %vm671, %v865, 0
        %875 = vmatpush.bf16.xpose.msra.mxu0 0
        %876 = vmatpush.bf16.xpose.msra.mxu0 0
        %877 = vmatpush.bf16.xpose.msra.mxu0 0
        %878 = vmatpush.bf16.xpose.msra.mxu0 0
        %879 = vmatpush.bf16.xpose.msra.mxu0 0
        %880 = vmatpush.bf16.xpose.msra.mxu0 0
        %881 = vmatpush.bf16.xpose.msra.mxu0 %v873
        %882 = vmatpush.bf16.xpose.msra.mxu0 %v870
        %883 = vmatmul.bf16.gmra.mxu0 %v867
        %v884 = vpop.f32.mrf.mxu0
        %v885 = vadd.f32 %v670, %v884
        %v886 = vpop.f32.mrf.mxu0
        %887 = vdwg.mxu0
        %v888 = vsel %vm693, %v885, -inf
        %889 = vmax.xlane.f32.xlu0 %v888
        %v890 = vpop.xlane.xlu0 %889
        %v891 = vsub.f32 %v885, %v890
        %v892 = vmul.f32 %v891, 1.442695
        %v893 = vpow.pop %v892
        %v894 = vsel %vm693, %v893, 0.0
        %895 = vadd.xlane.f32.xlu0 %v894
        %v896 = vpop.xlane.xlu0 %895
        %v897 = vrcp.pop %v896
        %v898 = vmul.f32 %v893, %v897
        %v899 = vpack.c.bf16 %v898, %v898
        %900 = vrot.lane.b32.xlu0 %v654, 104
        %v901 = vpop.permute.xlu0 %900
        %902 = vrot.lane.b32.xlu0 %v648, 104
        %v903 = vpop.permute.xlu0 %902
        %v906 = vsel %vm693, %v899, 0
        %v909 = vsel %vm642, %v903, 0
        %911 = vmatpush.bf16.msra.mxu0 0
        %912 = vmatpush.bf16.msra.mxu0 0
        %913 = vmatpush.bf16.msra.mxu0 0
        %914 = vmatpush.bf16.msra.mxu0 0
        %915 = vmatpush.bf16.msra.mxu0 0
        %916 = vmatpush.bf16.msra.mxu0 0
        %917 = vmatpush.bf16.msra.mxu0 %v909
        %918 = vmatpush.bf16.msra.mxu0 %v901
        %919 = vmatmul.bf16.gmra.mxu0 %v906
        %v920 = vpop.f32.mrf.mxu0
        %v921 = vadd.f32 0.0, %v920
        %v922 = vpop.f32.mrf.mxu0
        %923 = vdwg.mxu0
        %925 = vrot.lane.b32.xlu0 %v793, 8
        %v926 = vpop.permute.xlu0 %925
        %929 = vrot.lane.b32.xlu0 %v857, 16
        %v930 = vpop.permute.xlu0 %929
        %933 = vrot.lane.b32.xlu0 %v921, 24
        %v934 = vpop.permute.xlu0 %933
        %v936 = vsel %vm671, %v722, %v926
        %vm937 = vcmask 130048
        %v938 = vsel %vm937, %v936, %v930
        %v939 = vsel %vm693, %v938, %v934
        %vm940 = vcmask 261120
        %941 = vst.msk [vmem:[%s622] sm:$0xff] %vm940, %v939
        %s942 = sand.u32 %s288, 1
        %s943 = scalar_lea.sflag [#allocation4], %s942
        %s944 = sand.u32 %s288, 1
        %s945 = smul.addr %s944, 8
        %s946 = scalar_lea.vmem [#allocation14], %s945
        // Predicated region
        $region81: #{tpu_custom_call.1} parent=51 // pred_check
          %p947 = pneg %p298
        $region82: #{tpu_custom_call.1} parent=51 // pred_check_branch
          %949 = sbr.rel (%p947) target = $region84
        $region83: #{tpu_custom_call.1} parent=51 // pred_region
          %951 = vsyncadd %s943, 0
          %s952 = smul.addr %s38, 2
          %s953 = sadd.s32 %s39, %s952
          %s954 = smul.addr %s953, 8
          %s955 = scalar_lea.hbm %s8, %s954
          %s957 = sshll.u32 %s946, 4
          %s958 = int_to_ptr.vmem [resolvable:$true] %s957
          %s959 = sshll.u32 %s955, 4
          %s960 = int_to_ptr.hbm [resolvable:$true] %s959
          %962 = dma.vmem_to_hbm [thread:$0]  %s958, 128, %s960, %s943
        $region84: #{tpu_custom_call.1} parent=51 // pred_fallthru
          _
      $region52: #{tpu_custom_call.1} parent=5 // pred_fallthru
        _
      %p963 = scmp.le.s32.totalorder 2, %s29
      // Predicated region
      $region85: #{tpu_custom_call.1} parent=5 // pred_check
        %p964 = pneg %p963
      $region86: #{tpu_custom_call.1} parent=5 // pred_check_branch
        %966 = sbr.rel (%p964) target = $region88
      $region87: #{tpu_custom_call.1} parent=5 // pred_region
        %s967 = ssub.s32 %s29, 2
        // Predicated region
        $region89: #{tpu_custom_call.1} parent=87 // pred_check
          %p968 = pneg %p304
        $region90: #{tpu_custom_call.1} parent=87 // pred_check_branch
          %970 = sbr.rel (%p968) target = $region92
        $region91: #{tpu_custom_call.1} parent=87 // pred_region
          %s971 = sand.u32 %s289, 1
          %s972 = scalar_lea.sflag [#allocation4], %s971
          %s973 = sand.u32 %s289, 1
          %s974 = smul.addr %s973, 8
          %s975 = scalar_lea.vmem [#allocation14], %s974
          %977 = dma.done %s972, 128
        $region92: #{tpu_custom_call.1} parent=87 // pred_fallthru
          _
      $region88: #{tpu_custom_call.1} parent=5 // pred_fallthru
        _
    $region6: #{tpu_custom_call.1} parent=1 // loop_footer
      %s33 = sadd.s32 1, %s29
    $region7: #{tpu_custom_call.1} parent=1 // loop_footer_branch
      %28 = sbr.rel target = $region3
    $region8: #{tpu_custom_call.1} parent=1 // loop_exit
      _
    %978 = vsyncpa [#allocation3], 1
    %s979 = scalar_lea.sflag [#allocation3], 1
    %980 = vsyncpa %s979, 1
    %981 = vsyncpa [#allocation6], 1
    %s982 = scalar_lea.sflag [#allocation6], 1
    %983 = vsyncpa %s982, 1
    %984 = vsyncpa [#allocation9], 1
    %s985 = scalar_lea.sflag [#allocation9], 1
    %986 = vsyncpa %s985, 1
    %987 = vsyncpa [#allocation12], 1
    %s988 = scalar_lea.sflag [#allocation12], 1
    %989 = vsyncpa %s988, 1
    %990 = vsyncpa [#allocation4], 1
    %s991 = scalar_lea.sflag [#allocation4], 1
    %992 = vsyncpa %s991, 1

</llo_original>
